<compile_context>
chip_gen: v5e
topology: v5e:2x2
jax: 0.10.0
libtpu: 0.0.40
codegen_flags: <defaults>
</compile_context>

<pallas_src>
import functools

import jax
import jax.numpy as jnp
from jax.experimental import pallas as pl
from jax.experimental.pallas import tpu as pltpu


def _round_up(x, m):
    return ((x + m - 1) // m) * m


def mtp_kernel(x_ref, w_ref, b_ref, o_ref, *, num_modes, padded):
    # Single fused MXU matmul: [TB, D_in] @ [D_in, padded], f32 accumulate, + f32 bias.
    p = jnp.dot(x_ref[...], w_ref[...], preferred_element_type=jnp.float32) + b_ref[...]

    # Mode logits live in lanes 0..num_modes-1 (modes-first column permutation).
    # Only the first (<=128)-lane group participates in the softmax chain.
    sm_w = min(padded, 128)
    p_head = p[:, :sm_w] if sm_w < padded else p

    col = jax.lax.broadcasted_iota(jnp.int32, p_head.shape, 1)
    is_mode = col < num_modes

    # Numerically-stabilized masked softmax; exp(-inf) = 0 in non-mode lanes.
    logits = jnp.where(is_mode, p_head, -jnp.inf)
    m = jnp.max(logits, axis=-1, keepdims=True)
    e = jnp.exp(logits - m)
    s = jnp.sum(e, axis=-1, keepdims=True)
    r = pl.reciprocal(s, approx=True)        # EUP slot (nearly free)
    r = r * (2.0 - s * r)                    # one Newton step -> f32-accurate
    head_out = jnp.where(is_mode, e * r, p_head)

    if sm_w < padded:
        out = jnp.concatenate([head_out, p[:, sm_w:]], axis=-1)
    else:
        out = head_out
    o_ref[...] = out.astype(o_ref.dtype)


def prepare_mtp_weights(w1, b1, w2, b2, num_modes, num_points_per_trajectory,
                        *, compute_dtype=jnp.bfloat16):
    """One-time weight fusion / column permutation / padding / dtype cast.

    Call once per weight set and cache the result (do NOT re-run per forward call).
    Use compute_dtype=jnp.float32 when bit-level parity with the f32 two-layer
    reference is required.
    """
    d_in = w1.shape[0]
    traj_dim = num_modes * num_points_per_trajectory * 2
    out_dim = traj_dim + num_modes

    # (x @ W1 + b1) @ W2 + b2 == x @ (W1 @ W2) + (b1 @ W2 + b2)
    wf = jnp.dot(w1, w2)                                       # [d_in, out_dim]
    bf = jnp.dot(b1.reshape(1, -1), w2) + b2.reshape(1, -1)    # [1,    out_dim]

    # Modes-first column order -> softmax slice starts at lane 0.
    perm = jnp.concatenate([jnp.arange(traj_dim, out_dim), jnp.arange(traj_dim)])
    wf = wf[:, perm]
    bf = bf[:, perm]

    # Pad output width to a multiple of 64 (smallest lane-friendly slab that keeps
    # the HBM write stream small; block last dim == full array dim, so legal).
    padded = _round_up(out_dim, 64)
    wf = jnp.pad(wf, ((0, 0), (0, padded - out_dim))).astype(compute_dtype)
    bf = jnp.pad(bf, ((0, 0), (0, padded - out_dim))).astype(jnp.float32)

    return dict(wf=wf, bf=bf, d_in=d_in, num_modes=num_modes,
                num_points=num_points_per_trajectory, traj_dim=traj_dim,
                out_dim=out_dim, padded=padded, compute_dtype=compute_dtype)


def mtp_forward(features, prepared, *, block_b=8192, out_dtype=jnp.float32):
    """MTP forward. Returns (trajectories [B,M,P,2], mode_probabilities [B,M])."""
    B, d_in = features.shape
    assert d_in == prepared["d_in"]
    num_modes = prepared["num_modes"]
    num_points = prepared["num_points"]
    traj_dim = prepared["traj_dim"]
    padded = prepared["padded"]
    wf, bf = prepared["wf"], prepared["bf"]

    x = features.astype(prepared["compute_dtype"])

    # Batch tile: as large as possible (amortize per-step overhead), multiple of 8,
    # but capped near ceil(B/2) so the grid has >= 2 steps and the "parallel" batch
    # axis can shard across v7x's two TensorCores.
    if B <= 8:
        tb = B                                    # full-extent block (legal for any B)
    else:
        half = _round_up((B + 1) // 2, 8)
        tb = min(_round_up(block_b, 8), half)
    grid = (-(-B // tb),)

    # Explicit scoped-VMEM limit with headroom (v5e default is only 16 MiB).
    x_item = jnp.dtype(prepared["compute_dtype"]).itemsize
    o_item = jnp.dtype(out_dtype).itemsize
    tile_bytes = tb * d_in * x_item + tb * padded * o_item
    w_bytes = wf.size * wf.dtype.itemsize + bf.size * bf.dtype.itemsize
    vmem_limit = int(min(max(2 * tile_bytes + w_bytes + (4 << 20), 32 << 20), 56 << 20))

    out = pl.pallas_call(
        functools.partial(mtp_kernel, num_modes=num_modes, padded=padded),
        out_shape=jax.ShapeDtypeStruct((B, padded), out_dtype),
        grid_spec=pltpu.PrefetchScalarGridSpec(
            num_scalar_prefetch=0,
            grid=grid,
            in_specs=[
                pl.BlockSpec((tb, d_in), lambda i: (i, 0)),      # features: tiled over batch
                pl.BlockSpec((d_in, padded), lambda i: (0, 0)),  # fused weight: VMEM-resident
                pl.BlockSpec((1, padded), lambda i: (0, 0)),     # fused bias:   VMEM-resident
            ],
            out_specs=pl.BlockSpec((tb, padded), lambda i: (i, 0)),
        ),
        compiler_params=pltpu.CompilerParams(
            dimension_semantics=("parallel",),   # batch axis -> shards across v7x's 2 TCs
            vmem_limit_bytes=vmem_limit,
        ),
    )(x, wf, bf)

    # Metadata-only split / reshape in the wrapper.
    mode_probs = out[:, :num_modes]
    traj = out[:, num_modes:num_modes + traj_dim].reshape(B, num_modes, num_points, 2)
    return traj, mode_probs


if __name__ == "__main__":
    # Synthetic config matching the module's __init__ shapes.
    num_modes = 3
    num_points_per_trajectory = 6
    input_dim = 32
    n_hidden = 64
    batch = 2

    predictions_per_mode = num_points_per_trajectory * 2
    out_dim = num_modes * predictions_per_mode + num_modes   # 39

    key = jax.random.PRNGKey(0)
    k_x, k_w1, k_b1, k_w2, k_b2 = jax.random.split(key, 5)

    features = jax.random.normal(k_x, (batch, input_dim), dtype=jnp.float32)
    w1 = 0.1 * jax.random.normal(k_w1, (input_dim, n_hidden), dtype=jnp.float32)  # fc1 weight^T
    b1 = 0.1 * jax.random.normal(k_b1, (1, n_hidden), dtype=jnp.float32)          # fc1 bias
    w2 = 0.1 * jax.random.normal(k_w2, (n_hidden, out_dim), dtype=jnp.float32)    # fc2 weight^T
    b2 = 0.1 * jax.random.normal(k_b2, (1, out_dim), dtype=jnp.float32)           # fc2 bias

    # Plain-JAX reference: original un-fused two-layer formulation (f32).
    pred_ref = (features @ w1 + b1) @ w2 + b2
    modes_ref = jax.nn.softmax(pred_ref[:, -num_modes:], axis=-1)
    traj_ref = pred_ref[:, :-num_modes].reshape(batch, num_modes,
                                                num_points_per_trajectory, 2)

    # --- default path: bf16 activation/weight stream (perf default) ---
    prep_bf16 = prepare_mtp_weights(w1, b1, w2, b2, num_modes,
                                    num_points_per_trajectory)        # bf16 compute
    traj, modes = mtp_forward(features, prep_bf16)
    jax.block_until_ready((traj, modes))

    assert traj.shape == (batch, num_modes, num_points_per_trajectory, 2)
    assert modes.shape == (batch, num_modes)
    assert jnp.allclose(traj, traj_ref, atol=5e-2, rtol=5e-2)
    assert jnp.allclose(modes, modes_ref, atol=5e-2, rtol=5e-2)
    assert jnp.allclose(jnp.sum(modes, axis=-1), 1.0, atol=1e-3)

    # --- f32 path: tight numeric parity with the reference ---
    prep_f32 = prepare_mtp_weights(w1, b1, w2, b2, num_modes,
                                   num_points_per_trajectory,
                                   compute_dtype=jnp.float32)
    traj32, modes32 = mtp_forward(features, prep_f32)
    jax.block_until_ready((traj32, modes32))

    # Fused (x@(W1@W2)) association differs from ((x@W1)@W2) only by fp rounding.
    assert jnp.allclose(traj32, traj_ref, atol=1e-4, rtol=1e-4)
    assert jnp.allclose(modes32, modes_ref, atol=1e-5, rtol=1e-5)
    assert jnp.allclose(jnp.sum(modes32, axis=-1), 1.0, atol=1e-5)

    print("KERNEL_OK")
</pallas_src>

<mosaic_0001>
module attributes {stable_mosaic.version = 11 : i64} {
  func.func @mtp_kernel(%arg0: i32, %arg1: memref<2x32xbf16, #tpu.memory_space<vmem>>, %arg2: memref<32x64xbf16, #tpu.memory_space<vmem>>, %arg3: memref<1x64xf32, #tpu.memory_space<vmem>>, %arg4: memref<2x64xf32, #tpu.memory_space<vmem>>) attributes {dimension_semantics = [#tpu.dimension_semantics<parallel>], iteration_bounds = array<i64: 1>, scalar_prefetch = 0 : i64, scratch_operands = 0 : i64, tpu.core_type = #tpu.core_type<tc>, window_params = [{transform_indices = @transform_0, window_bounds = array<i64: 2, 32>}, {pipeline_mode = #tpu.pipeline_mode<synchronous>, transform_indices = @transform_1, window_bounds = array<i64: 32, 64>}, {pipeline_mode = #tpu.pipeline_mode<synchronous>, transform_indices = @transform_2, window_bounds = array<i64: 1, 64>}, {transform_indices = @transform_3, window_bounds = array<i64: 2, 64>}]} {
    %c0 = arith.constant 0 : index
    %c0_0 = arith.constant 0 : index
    %0 = vector.load %arg1[%c0, %c0_0] : memref<2x32xbf16, #tpu.memory_space<vmem>>, vector<2x32xbf16>
    %c0_1 = arith.constant 0 : index
    %c0_2 = arith.constant 0 : index
    %1 = vector.load %arg2[%c0_1, %c0_2] : memref<32x64xbf16, #tpu.memory_space<vmem>>, vector<32x64xbf16>
    %cst = arith.constant dense<0.000000e+00> : vector<2x64xf32>
    %2 = tpu.matmul %0, %1, %cst {dimension_numbers = #tpu.dot_dimension_numbers<[1], [0], [0], [1], [0, 0, 1, 1], [], []>} : vector<2x32xbf16>, vector<32x64xbf16>, vector<2x64xf32> -> vector<2x64xf32>
    %c0_3 = arith.constant 0 : index
    %c0_4 = arith.constant 0 : index
    %3 = vector.load %arg3[%c0_3, %c0_4] : memref<1x64xf32, #tpu.memory_space<vmem>>, vector<1x64xf32>
    %4 = vector.broadcast %3 : vector<1x64xf32> to vector<2x64xf32>
    %5 = arith.addf %2, %4 : vector<2x64xf32>
    %6 = tpu.iota {dimensions = array<i32: 1>} : vector<2x64xi32>
    %c3_i32 = arith.constant 3 : i32
    %7 = vector.broadcast %c3_i32 : i32 to vector<2x64xi32>
    %8 = arith.cmpi slt, %6, %7 : vector<2x64xi32>
    %cst_5 = arith.constant 0xFF800000 : f32
    %9 = vector.broadcast %cst_5 : f32 to vector<2x64xf32>
    %10 = arith.select %8, %5, %9 : vector<2x64xi1>, vector<2x64xf32>
    %cst_6 = arith.constant dense<0xFF800000> : vector<2xf32>
    %11 = vector.multi_reduction <maximumf>, %10, %cst_6 [1] : vector<2x64xf32> to vector<2xf32>
    %12 = vector.shape_cast %11 : vector<2xf32> to vector<2x1xf32>
    %13 = vector.broadcast %12 : vector<2x1xf32> to vector<2x64xf32>
    %14 = arith.subf %10, %13 : vector<2x64xf32>
    %15 = math.exp %14 : vector<2x64xf32>
    %cst_7 = arith.constant dense<0.000000e+00> : vector<2xf32>
    %16 = vector.multi_reduction <add>, %15, %cst_7 [1] : vector<2x64xf32> to vector<2xf32>
    %17 = vector.shape_cast %16 : vector<2xf32> to vector<2x1xf32>
    %18 = tpu.reciprocal %17 {approx = true} : vector<2x1xf32> -> vector<2x1xf32>
    %19 = arith.mulf %17, %18 : vector<2x1xf32>
    %cst_8 = arith.constant 2.000000e+00 : f32
    %20 = vector.broadcast %cst_8 : f32 to vector<2x1xf32>
    %21 = arith.subf %20, %19 : vector<2x1xf32>
    %22 = arith.mulf %18, %21 : vector<2x1xf32>
    %23 = vector.broadcast %22 : vector<2x1xf32> to vector<2x64xf32>
    %24 = arith.mulf %15, %23 : vector<2x64xf32>
    %25 = arith.select %8, %24, %5 : vector<2x64xi1>, vector<2x64xf32>
    %c0_9 = arith.constant 0 : index
    %c0_10 = arith.constant 0 : index
    %26 = vector.load %arg4[%c0_9, %c0_10] : memref<2x64xf32, #tpu.memory_space<vmem>>, vector<2x64xf32>
    tpu.vector_store %arg4[%c0_9, %c0_10], %25 {strides = array<i32>} : memref<2x64xf32, #tpu.memory_space<vmem>>, vector<2x64xf32>,
    return
  }
  func.func @transform_0(%arg0: i32) -> (i32, i32) {
    %c0_i32 = arith.constant 0 : i32
    %c0_i32_0 = arith.constant 0 : i32
    return %arg0, %c0_i32 : i32, i32
  }
  func.func @transform_1(%arg0: i32) -> (i32, i32) {
    %c0_i32 = arith.constant 0 : i32
    %c0_i32_0 = arith.constant 0 : i32
    %c0_i32_1 = arith.constant 0 : i32
    return %c0_i32, %c0_i32_0 : i32, i32
  }
  func.func @transform_2(%arg0: i32) -> (i32, i32) {
    %c0_i32 = arith.constant 0 : i32
    %c0_i32_0 = arith.constant 0 : i32
    %c0_i32_1 = arith.constant 0 : i32
    return %c0_i32, %c0_i32_0 : i32, i32
  }
  func.func @transform_3(%arg0: i32) -> (i32, i32) {
    %c0_i32 = arith.constant 0 : i32
    %c0_i32_0 = arith.constant 0 : i32
    return %arg0, %c0_i32 : i32, i32
  }
}

</mosaic_0001>

<llo_original>
// kernel: tpu_custom_call.1
$region0: #{tpu_custom_call.1}
  #allocation0 [shape = 'u32[]', space=smem, size = 0x4, offset = 0x4, fixed_abs, tag = 'smem constant byte address 0x4 - core index']
  #allocation1 [shape = 'u32[72,128]{1,0:T(1,128)}', space=vmem, size = 0x9000, scoped, tag = 'internal scratch']
  %s0 = inlined_call_operand.hbm [shape: bf16[2,32], index: 0, kind: input, shape index: {}]
  %s1 = inlined_call_operand.hbm [shape: bf16[32,64], index: 1, kind: input, shape index: {}]
  %s2 = inlined_call_operand.vmem [shape: f32[1,64], index: 2, kind: input, shape index: {}]
  %s3 = inlined_call_operand.hbm [shape: f32[2,64], index: 3, kind: output, shape index: {}]
  %s4 = sld [smem:[#allocation0]]
  $region30: #{tpu_custom_call.1} parent=0
    _
  %s6 = ssub.s32 1, %s4
  %s7 = scalar_select 0, %s6, %s4
  $region1: #{tpu_custom_call.1} parent=0
    #allocation2 [shape = 'u8[512]{0}', space=vmem, size = 0x400, scoped, tag = 'input window, operand 0, single buffered']
    #allocation3 [shape = 's32[1]{0}', space=sflag, size = 0x4, scoped, tag = 'scoped memory for tpu_custom_call.1']
    #allocation4 [shape = 's32[1]{0}', space=sflag, size = 0x4, scoped, tag = 'scoped memory for tpu_custom_call.1']
    #allocation5 [shape = 'u8[8192]{0}', space=vmem, size = 0x2000, scoped, tag = 'input window, operand 1, single buffered']
    #allocation6 [shape = 's32[1]{0}', space=sflag, size = 0x4, scoped, tag = 'scoped memory for tpu_custom_call.1']
    #allocation7 [shape = 'u8[1024]{0}', space=vmem, size = 0x400, scoped, tag = 'output window, operand 0, single buffered']
    %8 = vsyncpa [#allocation3], 0
    %9 = vsyncpa [#allocation6], 0
    %10 = vsyncpa [#allocation4], 0
    // Predicated region
    $region2: #{tpu_custom_call.1} parent=1 // pred_check
      _
    $region3: #{tpu_custom_call.1} parent=1 // pred_check_branch
      %12 = sbr.rel (0) target = $region5
    $region4: #{tpu_custom_call.1} parent=1 // pred_region
      %14 = vsyncadd [#allocation3], 0
      %s16 = sshll.u32 %s0, 4
      %s17 = int_to_ptr.hbm [resolvable:$true] %s16
      %s18 = sshll.u32 [#allocation2], 4
      %s19 = int_to_ptr.vmem [resolvable:$true] %s18
      %21 = dma.hbm_to_vmem [thread:$0]  %s17, 16, %s19, [#allocation3]
    $region5: #{tpu_custom_call.1} parent=1 // pred_fallthru
      _
    // Predicated region
    $region6: #{tpu_custom_call.1} parent=1 // pred_check
      _
    $region7: #{tpu_custom_call.1} parent=1 // pred_check_branch
      %23 = sbr.rel (0) target = $region9
    $region8: #{tpu_custom_call.1} parent=1 // pred_region
      %25 = vsyncadd [#allocation6], 0
      %s26 = sshll.u32 %s1, 4
      %s27 = int_to_ptr.hbm [resolvable:$true] %s26
      %s28 = sshll.u32 [#allocation5], 4
      %s29 = int_to_ptr.vmem [resolvable:$true] %s28
      %34 = dma.hbm_to_vmem [thread:$0]  %s27, 256, %s29, [#allocation6], 64, 64, 4
    $region9: #{tpu_custom_call.1} parent=1 // pred_fallthru
      _
    // Predicated region
    $region10: #{tpu_custom_call.1} parent=1 // pred_check
      _
    $region11: #{tpu_custom_call.1} parent=1 // pred_check_branch
      %36 = sbr.rel (0) target = $region13
    $region12: #{tpu_custom_call.1} parent=1 // pred_region
      _
    $region13: #{tpu_custom_call.1} parent=1 // pred_fallthru
      _
    // Predicated region
    $region14: #{tpu_custom_call.1} parent=1 // pred_check
      _
    $region15: #{tpu_custom_call.1} parent=1 // pred_check_branch
      %38 = sbr.rel (0) target = $region17
    $region16: #{tpu_custom_call.1} parent=1 // pred_region
      %40 = dma.done [#allocation3], 16
    $region17: #{tpu_custom_call.1} parent=1 // pred_fallthru
      _
    // Predicated region
    $region18: #{tpu_custom_call.1} parent=1 // pred_check
      _
    $region19: #{tpu_custom_call.1} parent=1 // pred_check_branch
      %42 = sbr.rel (0) target = $region21
    $region20: #{tpu_custom_call.1} parent=1 // pred_region
      %44 = dma.done [#allocation6], 256
    $region21: #{tpu_custom_call.1} parent=1 // pred_fallthru
      _
    %v46 = vld [vmem:[#allocation2] sm:$0x1]
    %v47 = vld [vmem:[#allocation5] sm:$0xf]
    %v48 = vld [vmem:[#allocation5 + $0x4] sm:$0xf]
    %v49 = vld [vmem:[#allocation5 + $0x8] sm:$0xf]
    %v50 = vld [vmem:[#allocation5 + $0xc] sm:$0xf]
    %v51 = vld [vmem:[%s2] sm:$0x1]
    %v53 = vperm.slane %v51, 0
    %v59 = vunpack.c.l.b16 %v47
    %v60 = vunpack.c.l.b16 %v48
    %v61 = vunpack.c.l.b16 %v49
    %v62 = vunpack.c.l.b16 %v50
    %v63 = vpack.c.b16 %v60, %v59
    %v64 = vpack.c.b16 %v62, %v61
    %vm67 = vcmask 261120
    %v69 = vsel %vm67, %v46, 0
    %71 = vmatpush.bf16.msra.mxu0 0
    %72 = vmatpush.bf16.msra.mxu0 0
    %73 = vmatpush.bf16.msra.mxu0 0
    %74 = vmatpush.bf16.msra.mxu0 0
    %75 = vmatpush.bf16.msra.mxu0 0
    %76 = vmatpush.bf16.msra.mxu0 0
    %77 = vmatpush.bf16.msra.mxu0 %v64
    %78 = vmatpush.bf16.msra.mxu0 %v63
    %79 = vmatmul.bf16.gmra.mxu0 %v69
    %v80 = vpop.f32.mrf.mxu0
    %v81 = vadd.f32 %v53, %v80
    %v82 = vpop.f32.mrf.mxu0
    %83 = vdwg.mxu0
    %v84 = vlaneseq
    %v85 = vand.u32 %v84, 127
    %vm86 = vcmp.lt.s32.totalorder %v85, 3
    %v87 = vsel %vm86, %v81, -inf
    %vm88 = vcmask 517120
    %v89 = vsel %vm88, %v87, -inf
    %90 = vmax.xlane.f32.xlu0 %v89
    %v91 = vpop.xlane.xlu0 %90
    %v92 = vsub.f32 %v87, %v91
    %v93 = vmul.f32 %v92, 1.442695
    %v94 = vpow.pop %v93
    %v95 = vsel %vm88, %v94, 0.0
    %96 = vadd.xlane.f32.xlu0 %v95
    %v97 = vpop.xlane.xlu0 %96
    %v98 = vrcp.pop %v97
    %v99 = vmul.f32 %v97, %v98
    %v100 = vsub.f32 2.0, %v99
    %v101 = vmul.f32 %v98, %v100
    %v102 = vmul.f32 %v94, %v101
    %v103 = vsel %vm86, %v102, %v81
    %104 = vst.msk [vmem:[#allocation7] sm:$0x3] %vm88, %v103
    // Predicated region
    $region22: #{tpu_custom_call.1} parent=1 // pred_check
      _
    $region23: #{tpu_custom_call.1} parent=1 // pred_check_branch
      %106 = sbr.rel (0) target = $region25
    $region24: #{tpu_custom_call.1} parent=1 // pred_region
      %108 = vsyncadd [#allocation4], 0
      %s110 = sshll.u32 [#allocation7], 4
      %s111 = int_to_ptr.vmem [resolvable:$true] %s110
      %s112 = sshll.u32 %s3, 4
      %s113 = int_to_ptr.hbm [resolvable:$true] %s112
      %115 = dma.vmem_to_hbm [thread:$0]  %s111, 32, %s113, [#allocation4]
    $region25: #{tpu_custom_call.1} parent=1 // pred_fallthru
      _
    // Predicated region
    $region26: #{tpu_custom_call.1} parent=1 // pred_check
      _
    $region27: #{tpu_custom_call.1} parent=1 // pred_check_branch
      %117 = sbr.rel (0) target = $region29
    $region28: #{tpu_custom_call.1} parent=1 // pred_region
      %119 = dma.done [#allocation4], 32
    $region29: #{tpu_custom_call.1} parent=1 // pred_fallthru
      _
    %120 = vsyncpa [#allocation3], 1
    %121 = vsyncpa [#allocation6], 1
    %122 = vsyncpa [#allocation4], 1

</llo_original>
